<compile_context>
chip_gen: v6e
topology: v6e:2x2x1
jax: 0.10.0
libtpu: 0.0.40
codegen_flags: <defaults>
</compile_context>

<pallas_src>
import functools

import jax
import jax.numpy as jnp
from jax import lax
from jax.experimental import pallas as pl
from jax.experimental.pallas import tpu as pltpu


def _gat_layer_kernel(bias_ref, h_src_ref, h_dst_ref, wf_ref, out_ref,
                      *, H, D, negative_slope):
    """One GAT layer, one destination-row tile per grid step.

    bias_ref  : (TILE, N)     bf16 additive mask tile, bias[dst, src] = 0 on an
                              edge src->dst, -1e30 otherwise (softmax over src).
    h_src_ref : (N, Fin)      bf16 features of ALL nodes (resident across tiles).
    h_dst_ref : (TILE, Fin)   bf16 features of this tile's destination nodes.
    wf_ref    : (Fin, HD+2H)  bf16 fused weights: [per-head W | W@attn_r | W@attn_l].
    out_ref   : (TILE, H*D)   lane-dense output tile (== h.flatten(1) rows).
    """
    HD = H * D

    # Upcast the bias tile ONCE per grid step and reuse it across all heads
    # (saves H-1 full-tile cast passes; the (TILE, N) f32 copy is the natural
    # per-step working set now that the dst axis is tiled).
    bias = bias_ref[...].astype(jnp.float32)                         # (TILE, N)

    wf = wf_ref[...]                                                 # bf16

    # Full-src projection (recomputed per tile; negligible MXU work, keeps the
    # dst grid axis embarrassingly parallel for megacore on v7x).
    zf_src = jnp.dot(h_src_ref[...], wf,
                     preferred_element_type=jnp.float32)             # (N, HD+2H)
    z = zf_src[:, :HD].astype(jnp.bfloat16)                          # cast once, sliced per head
    el = zf_src[:, HD + H:]                                          # (N, H)  el[src, h]

    # (H, N) view of el via a tiny identity contraction on the MXU (exact).
    rows = lax.broadcasted_iota(jnp.int32, (H, H), 0)
    cols = lax.broadcasted_iota(jnp.int32, (H, H), 1)
    eye_h = (rows == cols).astype(jnp.float32)
    el_t = lax.dot_general(eye_h, el, (((1,), (1,)), ((), ())),
                           preferred_element_type=jnp.float32)       # (H, N)

    # Dst-tile projection: only the folded attn_r columns are needed.
    zf_dst = jnp.dot(h_dst_ref[...], wf,
                     preferred_element_type=jnp.float32)             # (TILE, HD+2H)
    er = zf_dst[:, HD:HD + H]                                        # (TILE, H) er[dst, h]

    rst_blocks = []
    for hh in range(H):                                              # static unroll, H is small
        # e[dst, src] = leaky_relu(el[src] + er[dst]); masked edge-softmax over
        # src via the precomputed additive bias.  Every node is assumed to have
        # >= 1 in-edge (self loops added in the driver).
        s = er[:, hh:hh + 1] + el_t[hh:hh + 1, :]                    # (TILE, N)
        s = jnp.where(s > 0, s, negative_slope * s)                  # leaky ReLU
        s = s + bias                                                 # non-edges -> -1e30
        m = jnp.max(s, axis=-1, keepdims=True)
        p = jnp.exp(s - m)                                           # masked -> 0
        denom = jnp.sum(p, axis=-1, keepdims=True)                   # >= 1
        # AV matmul first, normalize after: O(TILE*D) multiplies, not O(TILE*N).
        rst = jnp.dot(p.astype(jnp.bfloat16), z[:, hh * D:(hh + 1) * D],
                      preferred_element_type=jnp.float32)            # (TILE, D)
        rst_blocks.append(rst * pl.reciprocal(denom, approx=True))   # EUP slot

    out = jnp.concatenate(rst_blocks, axis=-1)                       # (TILE, HD) lane-dense
    # Activation (module applies self.activation on every layer, incl. last): ELU.
    # TODO(synk): GATConv residual (False in spec) and its learnable output bias
    # (DGL default bias=True) are omitted.
    out = jnp.where(out > 0, out, jnp.exp(jnp.minimum(out, 0.0)) - 1.0)
    out_ref[...] = out.astype(out_ref.dtype)                         # single wide store


def _pick_dst_tile(n, target=256):
    """Largest dst tile <= target that divides N (multiple of 8), else full N."""
    if n <= target:
        return n
    for t in (target, 128, 64, 32, 16, 8):
        if n % t == 0:
            return t
    # TODO(synk): pad N to a multiple of 8 to enable tiling for ragged graphs.
    return n


def gat_forward(x, adj, params, *, negative_slope=0.2, dst_tile=256):
    """Mirrors GAT.forward.

    x      : (N, in_dim) node features.
    adj    : (N, N) adjacency with adj[dst, src] > 0 iff there is an edge src->dst.
    params : list of (W (H, Fin, D), attn_l (H, 1, D), attn_r (H, 1, D)) per layer.
    Returns a list of (N, D) arrays, one per head of the last layer.
    """
    # TODO(synk): feat_drop / attn_drop are inference no-ops and are skipped.
    N = x.shape[0]
    # Additive edge-softmax mask in bf16: 0 on edges, -1e30 elsewhere.
    bias = jnp.where(adj > 0, 0.0, -1e30).astype(jnp.bfloat16)

    TILE = _pick_dst_tile(N, dst_tile)
    num_tiles = N // TILE

    h = x.astype(jnp.bfloat16)
    num_layers = len(params)
    out = None
    for li, (w, al, ar) in enumerate(params):
        H, fin, D = w.shape
        HD = H * D

        # Fused projection weights: [per-head W (head-major) | W@attn_r | W@attn_l],
        # pre-cast to bf16 in the wrapper.
        wz = jnp.transpose(w, (1, 0, 2)).reshape(fin, HD)                 # (fin, H*D)
        wr = jnp.einsum('hfd,hd->fh', w, ar[:, 0, :])                     # (fin, H) -> er
        wl = jnp.einsum('hfd,hd->fh', w, al[:, 0, :])                     # (fin, H) -> el
        wf = jnp.concatenate([wz, wr, wl], axis=1).astype(jnp.bfloat16)   # (fin, HD+2H)

        last = li == num_layers - 1
        out_dtype = jnp.float32 if last else jnp.bfloat16

        flops = (num_tiles * 2 * N * fin * (HD + 2 * H)   # per-tile src projection
                 + 2 * N * fin * (HD + 2 * H)             # dst projections (summed over tiles)
                 + 2 * H * N * N * D                      # AV matmuls
                 + 6 * H * N * N)                         # softmax elementwise
        cost = pl.CostEstimate(
            flops=int(flops),
            transcendentals=int(H * N * N + N * HD),
            bytes_accessed=int(2 * N * N + num_tiles * 2 * N * fin
                               + 2 * fin * (HD + 2 * H) + 4 * N * HD))

        out = pl.pallas_call(
            functools.partial(_gat_layer_kernel, H=H, D=D,
                              negative_slope=negative_slope),
            out_shape=jax.ShapeDtypeStruct((N, HD), out_dtype),
            grid_spec=pltpu.PrefetchScalarGridSpec(
                num_scalar_prefetch=0,
                grid=(num_tiles,),
                in_specs=[
                    pl.BlockSpec((TILE, N), lambda i: (i, 0)),           # bias tile (pipelined)
                    pl.BlockSpec((N, fin), lambda i: (0, 0)),            # all-src feats (resident)
                    pl.BlockSpec((TILE, fin), lambda i: (i, 0)),         # dst-tile feats
                    pl.BlockSpec((fin, HD + 2 * H), lambda i: (0, 0)),   # fused weights
                ],
                out_specs=pl.BlockSpec((TILE, HD), lambda i: (i, 0)),
            ),
            compiler_params=pltpu.CompilerParams(
                dimension_semantics=("parallel",),        # megacore sharding on v7x
                vmem_limit_bytes=64 * 1024 * 1024),
            cost_estimate=cost,
        )(bias, h, h, wf)

        h = out  # next layer input, already lane-dense == h.flatten(1), kept bf16

    H_last, _, D_last = params[-1][0].shape
    # h[:, i] of the (N, H, D) DGL output == columns [i*D, (i+1)*D) of flatten(1).
    return [out[:, i * D_last:(i + 1) * D_last] for i in range(H_last)]


if __name__ == "__main__":
    key = jax.random.PRNGKey(0)

    N = 16               # number of graph nodes
    in_dim = 8
    num_hidden = 8
    heads = [4, 2]
    num_layers = 2
    negative_slope = 0.2

    k_adj, k_x = jax.random.split(key)

    # Deterministic synthetic graph: sparse-ish random edges + self loops
    # (self loops guarantee every node has at least one incoming edge).
    # Convention: adj[dst, src] > 0 iff edge src -> dst.
    adj = (jax.random.uniform(k_adj, (N, N)) < 0.3).astype(jnp.float32)
    adj = jnp.maximum(adj, jnp.eye(N, dtype=jnp.float32))

    x = jax.random.normal(k_x, (N, in_dim), dtype=jnp.float32)

    # Deterministic parameter init (Xavier-ish scaling), one tuple per layer.
    params = []
    fin = in_dim
    for l in range(num_layers):
        kl = jax.random.fold_in(key, 100 + l)
        kw, ka, kb = jax.random.split(kl, 3)
        H = heads[l]
        w = jax.random.normal(kw, (H, fin, num_hidden), jnp.float32) / jnp.sqrt(fin)
        al = 0.1 * jax.random.normal(ka, (H, 1, num_hidden), jnp.float32)
        ar = 0.1 * jax.random.normal(kb, (H, 1, num_hidden), jnp.float32)
        params.append((w, al, ar))
        fin = num_hidden * H

    head_outs = gat_forward(x, adj, params, negative_slope=negative_slope)
    head_outs = jax.block_until_ready(head_outs)

    assert len(head_outs) == heads[-1]
    assert all(o.shape == (N, num_hidden) for o in head_outs)
    assert all(bool(jnp.all(jnp.isfinite(o))) for o in head_outs)
    print("KERNEL_OK")
</pallas_src>

<mosaic_0001>
module attributes {stable_mosaic.version = 11 : i64} {
  func.func @_gat_layer_kernel(%arg0: i32, %arg1: memref<16x16xbf16, #tpu.memory_space<vmem>>, %arg2: memref<16x8xbf16, #tpu.memory_space<vmem>>, %arg3: memref<16x8xbf16, #tpu.memory_space<vmem>>, %arg4: memref<8x40xbf16, #tpu.memory_space<vmem>>, %arg5: memref<16x32xbf16, #tpu.memory_space<vmem>>) attributes {dimension_semantics = [#tpu.dimension_semantics<parallel>], iteration_bounds = array<i64: 1>, scalar_prefetch = 0 : i64, scratch_operands = 0 : i64, tpu.core_type = #tpu.core_type<tc>, window_params = [{transform_indices = @transform_0, window_bounds = array<i64: 16, 16>}, {pipeline_mode = #tpu.pipeline_mode<synchronous>, transform_indices = @transform_1, window_bounds = array<i64: 16, 8>}, {transform_indices = @transform_2, window_bounds = array<i64: 16, 8>}, {pipeline_mode = #tpu.pipeline_mode<synchronous>, transform_indices = @transform_3, window_bounds = array<i64: 8, 40>}, {transform_indices = @transform_4, window_bounds = array<i64: 16, 32>}]} {
    %c0 = arith.constant 0 : index
    %c0_0 = arith.constant 0 : index
    %0 = vector.load %arg1[%c0, %c0_0] : memref<16x16xbf16, #tpu.memory_space<vmem>>, vector<16x16xbf16>
    %1 = arith.extf %0 : vector<16x16xbf16> to vector<16x16xf32>
    %c0_1 = arith.constant 0 : index
    %c0_2 = arith.constant 0 : index
    %2 = vector.load %arg4[%c0_1, %c0_2] : memref<8x40xbf16, #tpu.memory_space<vmem>>, vector<8x40xbf16>
    %c0_3 = arith.constant 0 : index
    %c0_4 = arith.constant 0 : index
    %3 = vector.load %arg2[%c0_3, %c0_4] : memref<16x8xbf16, #tpu.memory_space<vmem>>, vector<16x8xbf16>
    %cst = arith.constant dense<0.000000e+00> : vector<16x40xf32>
    %4 = tpu.matmul %3, %2, %cst {dimension_numbers = #tpu.dot_dimension_numbers<[1], [0], [0], [1], [0, 0, 1, 1], [], []>} : vector<16x8xbf16>, vector<8x40xbf16>, vector<16x40xf32> -> vector<16x40xf32>
    %5 = vector.extract_strided_slice %4 {offsets = [0, 0], sizes = [16, 32], strides = [1, 1]} : vector<16x40xf32> to vector<16x32xf32>
    %6 = arith.truncf %5 : vector<16x32xf32> to vector<16x32xbf16>
    %7 = vector.extract_strided_slice %4 {offsets = [0, 36], sizes = [16, 4], strides = [1, 1]} : vector<16x40xf32> to vector<16x4xf32>
    %8 = tpu.iota {dimensions = array<i32: 0>} : vector<4x4xi32>
    %9 = tpu.iota {dimensions = array<i32: 1>} : vector<4x4xi32>
    %10 = arith.cmpi eq, %8, %9 : vector<4x4xi32>
    %11 = arith.extui %10 : vector<4x4xi1> to vector<4x4xi32>
    %12 = arith.sitofp %11 : vector<4x4xi32> to vector<4x4xf32>
    %cst_5 = arith.constant dense<0.000000e+00> : vector<4x16xf32>
    %13 = tpu.matmul %12, %7, %cst_5 {dimension_numbers = #tpu.dot_dimension_numbers<[1], [1], [0], [0], [0, 0, 1, 0], [], []>} : vector<4x4xf32>, vector<16x4xf32>, vector<4x16xf32> -> vector<4x16xf32>
    %c0_6 = arith.constant 0 : index
    %c0_7 = arith.constant 0 : index
    %14 = vector.load %arg3[%c0_6, %c0_7] : memref<16x8xbf16, #tpu.memory_space<vmem>>, vector<16x8xbf16>
    %cst_8 = arith.constant dense<0.000000e+00> : vector<16x40xf32>
    %15 = tpu.matmul %14, %2, %cst_8 {dimension_numbers = #tpu.dot_dimension_numbers<[1], [0], [0], [1], [0, 0, 1, 1], [], []>} : vector<16x8xbf16>, vector<8x40xbf16>, vector<16x40xf32> -> vector<16x40xf32>
    %16 = vector.extract_strided_slice %15 {offsets = [0, 32], sizes = [16, 4], strides = [1, 1]} : vector<16x40xf32> to vector<16x4xf32>
    %17 = vector.extract_strided_slice %16 {offsets = [0, 0], sizes = [16, 1], strides = [1, 1]} : vector<16x4xf32> to vector<16x1xf32>
    %18 = vector.extract_strided_slice %13 {offsets = [0, 0], sizes = [1, 16], strides = [1, 1]} : vector<4x16xf32> to vector<1x16xf32>
    %19 = vector.broadcast %17 : vector<16x1xf32> to vector<16x16xf32>
    %20 = vector.broadcast %18 : vector<1x16xf32> to vector<16x16xf32>
    %21 = arith.addf %19, %20 : vector<16x16xf32>
    %cst_9 = arith.constant 0.000000e+00 : f32
    %22 = vector.broadcast %cst_9 : f32 to vector<16x16xf32>
    %23 = arith.cmpf ogt, %21, %22 : vector<16x16xf32>
    %cst_10 = arith.constant 2.000000e-01 : f32
    %24 = vector.broadcast %cst_10 : f32 to vector<16x16xf32>
    %25 = arith.mulf %24, %21 : vector<16x16xf32>
    %26 = arith.select %23, %21, %25 : vector<16x16xi1>, vector<16x16xf32>
    %27 = arith.addf %26, %1 : vector<16x16xf32>
    %cst_11 = arith.constant dense<0xFF800000> : vector<16xf32>
    %28 = vector.multi_reduction <maximumf>, %27, %cst_11 [1] : vector<16x16xf32> to vector<16xf32>
    %29 = vector.shape_cast %28 : vector<16xf32> to vector<16x1xf32>
    %30 = vector.broadcast %29 : vector<16x1xf32> to vector<16x16xf32>
    %31 = arith.subf %27, %30 : vector<16x16xf32>
    %32 = math.exp %31 : vector<16x16xf32>
    %cst_12 = arith.constant dense<0.000000e+00> : vector<16xf32>
    %33 = vector.multi_reduction <add>, %32, %cst_12 [1] : vector<16x16xf32> to vector<16xf32>
    %34 = vector.shape_cast %33 : vector<16xf32> to vector<16x1xf32>
    %35 = arith.truncf %32 : vector<16x16xf32> to vector<16x16xbf16>
    %36 = vector.extract_strided_slice %6 {offsets = [0, 0], sizes = [16, 8], strides = [1, 1]} : vector<16x32xbf16> to vector<16x8xbf16>
    %cst_13 = arith.constant dense<0.000000e+00> : vector<16x8xf32>
    %37 = tpu.matmul %35, %36, %cst_13 {dimension_numbers = #tpu.dot_dimension_numbers<[1], [0], [0], [1], [0, 0, 1, 1], [], []>} : vector<16x16xbf16>, vector<16x8xbf16>, vector<16x8xf32> -> vector<16x8xf32>
    %38 = tpu.reciprocal %34 {approx = true} : vector<16x1xf32> -> vector<16x1xf32>
    %39 = vector.broadcast %38 : vector<16x1xf32> to vector<16x8xf32>
    %40 = arith.mulf %37, %39 : vector<16x8xf32>
    %41 = vector.extract_strided_slice %16 {offsets = [0, 1], sizes = [16, 1], strides = [1, 1]} : vector<16x4xf32> to vector<16x1xf32>
    %42 = vector.extract_strided_slice %13 {offsets = [1, 0], sizes = [1, 16], strides = [1, 1]} : vector<4x16xf32> to vector<1x16xf32>
    %43 = vector.broadcast %41 : vector<16x1xf32> to vector<16x16xf32>
    %44 = vector.broadcast %42 : vector<1x16xf32> to vector<16x16xf32>
    %45 = arith.addf %43, %44 : vector<16x16xf32>
    %cst_14 = arith.constant 0.000000e+00 : f32
    %46 = vector.broadcast %cst_14 : f32 to vector<16x16xf32>
    %47 = arith.cmpf ogt, %45, %46 : vector<16x16xf32>
    %cst_15 = arith.constant 2.000000e-01 : f32
    %48 = vector.broadcast %cst_15 : f32 to vector<16x16xf32>
    %49 = arith.mulf %48, %45 : vector<16x16xf32>
    %50 = arith.select %47, %45, %49 : vector<16x16xi1>, vector<16x16xf32>
    %51 = arith.addf %50, %1 : vector<16x16xf32>
    %cst_16 = arith.constant dense<0xFF800000> : vector<16xf32>
    %52 = vector.multi_reduction <maximumf>, %51, %cst_16 [1] : vector<16x16xf32> to vector<16xf32>
    %53 = vector.shape_cast %52 : vector<16xf32> to vector<16x1xf32>
    %54 = vector.broadcast %53 : vector<16x1xf32> to vector<16x16xf32>
    %55 = arith.subf %51, %54 : vector<16x16xf32>
    %56 = math.exp %55 : vector<16x16xf32>
    %cst_17 = arith.constant dense<0.000000e+00> : vector<16xf32>
    %57 = vector.multi_reduction <add>, %56, %cst_17 [1] : vector<16x16xf32> to vector<16xf32>
    %58 = vector.shape_cast %57 : vector<16xf32> to vector<16x1xf32>
    %59 = arith.truncf %56 : vector<16x16xf32> to vector<16x16xbf16>
    %60 = vector.extract_strided_slice %6 {offsets = [0, 8], sizes = [16, 8], strides = [1, 1]} : vector<16x32xbf16> to vector<16x8xbf16>
    %cst_18 = arith.constant dense<0.000000e+00> : vector<16x8xf32>
    %61 = tpu.matmul %59, %60, %cst_18 {dimension_numbers = #tpu.dot_dimension_numbers<[1], [0], [0], [1], [0, 0, 1, 1], [], []>} : vector<16x16xbf16>, vector<16x8xbf16>, vector<16x8xf32> -> vector<16x8xf32>
    %62 = tpu.reciprocal %58 {approx = true} : vector<16x1xf32> -> vector<16x1xf32>
    %63 = vector.broadcast %62 : vector<16x1xf32> to vector<16x8xf32>
    %64 = arith.mulf %61, %63 : vector<16x8xf32>
    %65 = vector.extract_strided_slice %16 {offsets = [0, 2], sizes = [16, 1], strides = [1, 1]} : vector<16x4xf32> to vector<16x1xf32>
    %66 = vector.extract_strided_slice %13 {offsets = [2, 0], sizes = [1, 16], strides = [1, 1]} : vector<4x16xf32> to vector<1x16xf32>
    %67 = vector.broadcast %65 : vector<16x1xf32> to vector<16x16xf32>
    %68 = vector.broadcast %66 : vector<1x16xf32> to vector<16x16xf32>
    %69 = arith.addf %67, %68 : vector<16x16xf32>
    %cst_19 = arith.constant 0.000000e+00 : f32
    %70 = vector.broadcast %cst_19 : f32 to vector<16x16xf32>
    %71 = arith.cmpf ogt, %69, %70 : vector<16x16xf32>
    %cst_20 = arith.constant 2.000000e-01 : f32
    %72 = vector.broadcast %cst_20 : f32 to vector<16x16xf32>
    %73 = arith.mulf %72, %69 : vector<16x16xf32>
    %74 = arith.select %71, %69, %73 : vector<16x16xi1>, vector<16x16xf32>
    %75 = arith.addf %74, %1 : vector<16x16xf32>
    %cst_21 = arith.constant dense<0xFF800000> : vector<16xf32>
    %76 = vector.multi_reduction <maximumf>, %75, %cst_21 [1] : vector<16x16xf32> to vector<16xf32>
    %77 = vector.shape_cast %76 : vector<16xf32> to vector<16x1xf32>
    %78 = vector.broadcast %77 : vector<16x1xf32> to vector<16x16xf32>
    %79 = arith.subf %75, %78 : vector<16x16xf32>
    %80 = math.exp %79 : vector<16x16xf32>
    %cst_22 = arith.constant dense<0.000000e+00> : vector<16xf32>
    %81 = vector.multi_reduction <add>, %80, %cst_22 [1] : vector<16x16xf32> to vector<16xf32>
    %82 = vector.shape_cast %81 : vector<16xf32> to vector<16x1xf32>
    %83 = arith.truncf %80 : vector<16x16xf32> to vector<16x16xbf16>
    %84 = vector.extract_strided_slice %6 {offsets = [0, 16], sizes = [16, 8], strides = [1, 1]} : vector<16x32xbf16> to vector<16x8xbf16>
    %cst_23 = arith.constant dense<0.000000e+00> : vector<16x8xf32>
    %85 = tpu.matmul %83, %84, %cst_23 {dimension_numbers = #tpu.dot_dimension_numbers<[1], [0], [0], [1], [0, 0, 1, 1], [], []>} : vector<16x16xbf16>, vector<16x8xbf16>, vector<16x8xf32> -> vector<16x8xf32>
    %86 = tpu.reciprocal %82 {approx = true} : vector<16x1xf32> -> vector<16x1xf32>
    %87 = vector.broadcast %86 : vector<16x1xf32> to vector<16x8xf32>
    %88 = arith.mulf %85, %87 : vector<16x8xf32>
    %89 = vector.extract_strided_slice %16 {offsets = [0, 3], sizes = [16, 1], strides = [1, 1]} : vector<16x4xf32> to vector<16x1xf32>
    %90 = vector.extract_strided_slice %13 {offsets = [3, 0], sizes = [1, 16], strides = [1, 1]} : vector<4x16xf32> to vector<1x16xf32>
    %91 = vector.broadcast %89 : vector<16x1xf32> to vector<16x16xf32>
    %92 = vector.broadcast %90 : vector<1x16xf32> to vector<16x16xf32>
    %93 = arith.addf %91, %92 : vector<16x16xf32>
    %cst_24 = arith.constant 0.000000e+00 : f32
    %94 = vector.broadcast %cst_24 : f32 to vector<16x16xf32>
    %95 = arith.cmpf ogt, %93, %94 : vector<16x16xf32>
    %cst_25 = arith.constant 2.000000e-01 : f32
    %96 = vector.broadcast %cst_25 : f32 to vector<16x16xf32>
    %97 = arith.mulf %96, %93 : vector<16x16xf32>
    %98 = arith.select %95, %93, %97 : vector<16x16xi1>, vector<16x16xf32>
    %99 = arith.addf %98, %1 : vector<16x16xf32>
    %cst_26 = arith.constant dense<0xFF800000> : vector<16xf32>
    %100 = vector.multi_reduction <maximumf>, %99, %cst_26 [1] : vector<16x16xf32> to vector<16xf32>
    %101 = vector.shape_cast %100 : vector<16xf32> to vector<16x1xf32>
    %102 = vector.broadcast %101 : vector<16x1xf32> to vector<16x16xf32>
    %103 = arith.subf %99, %102 : vector<16x16xf32>
    %104 = math.exp %103 : vector<16x16xf32>
    %cst_27 = arith.constant dense<0.000000e+00> : vector<16xf32>
    %105 = vector.multi_reduction <add>, %104, %cst_27 [1] : vector<16x16xf32> to vector<16xf32>
    %106 = vector.shape_cast %105 : vector<16xf32> to vector<16x1xf32>
    %107 = arith.truncf %104 : vector<16x16xf32> to vector<16x16xbf16>
    %108 = vector.extract_strided_slice %6 {offsets = [0, 24], sizes = [16, 8], strides = [1, 1]} : vector<16x32xbf16> to vector<16x8xbf16>
    %cst_28 = arith.constant dense<0.000000e+00> : vector<16x8xf32>
    %109 = tpu.matmul %107, %108, %cst_28 {dimension_numbers = #tpu.dot_dimension_numbers<[1], [0], [0], [1], [0, 0, 1, 1], [], []>} : vector<16x16xbf16>, vector<16x8xbf16>, vector<16x8xf32> -> vector<16x8xf32>
    %110 = tpu.reciprocal %106 {approx = true} : vector<16x1xf32> -> vector<16x1xf32>
    %111 = vector.broadcast %110 : vector<16x1xf32> to vector<16x8xf32>
    %112 = arith.mulf %109, %111 : vector<16x8xf32>
    %113 = tpu.concatenate %40, %64, %88, %112 in 1 : vector<16x8xf32>, vector<16x8xf32>, vector<16x8xf32>, vector<16x8xf32> -> vector<16x32xf32>
    %cst_29 = arith.constant 0.000000e+00 : f32
    %114 = vector.broadcast %cst_29 : f32 to vector<16x32xf32>
    %115 = arith.cmpf ogt, %113, %114 : vector<16x32xf32>
    %cst_30 = arith.constant 0.000000e+00 : f32
    %116 = vector.broadcast %cst_30 : f32 to vector<16x32xf32>
    %117 = arith.minimumf %113, %116 : vector<16x32xf32>
    %118 = math.exp %117 : vector<16x32xf32>
    %cst_31 = arith.constant 1.000000e+00 : f32
    %119 = vector.broadcast %cst_31 : f32 to vector<16x32xf32>
    %120 = arith.subf %118, %119 : vector<16x32xf32>
    %121 = arith.select %115, %113, %120 : vector<16x32xi1>, vector<16x32xf32>
    %122 = arith.truncf %121 : vector<16x32xf32> to vector<16x32xbf16>
    %c0_32 = arith.constant 0 : index
    %c0_33 = arith.constant 0 : index
    %123 = vector.load %arg5[%c0_32, %c0_33] : memref<16x32xbf16, #tpu.memory_space<vmem>>, vector<16x32xbf16>
    tpu.vector_store %arg5[%c0_32, %c0_33], %122 {strides = array<i32>} : memref<16x32xbf16, #tpu.memory_space<vmem>>, vector<16x32xbf16>,
    return
  }
  func.func @transform_0(%arg0: i32) -> (i32, i32) {
    %c0_i32 = arith.constant 0 : i32
    %c0_i32_0 = arith.constant 0 : i32
    return %arg0, %c0_i32 : i32, i32
  }
  func.func @transform_1(%arg0: i32) -> (i32, i32) {
    %c0_i32 = arith.constant 0 : i32
    %c0_i32_0 = arith.constant 0 : i32
    %c0_i32_1 = arith.constant 0 : i32
    return %c0_i32, %c0_i32_0 : i32, i32
  }
  func.func @transform_2(%arg0: i32) -> (i32, i32) {
    %c0_i32 = arith.constant 0 : i32
    %c0_i32_0 = arith.constant 0 : i32
    return %arg0, %c0_i32 : i32, i32
  }
  func.func @transform_3(%arg0: i32) -> (i32, i32) {
    %c0_i32 = arith.constant 0 : i32
    %c0_i32_0 = arith.constant 0 : i32
    %c0_i32_1 = arith.constant 0 : i32
    return %c0_i32, %c0_i32_0 : i32, i32
  }
  func.func @transform_4(%arg0: i32) -> (i32, i32) {
    %c0_i32 = arith.constant 0 : i32
    %c0_i32_0 = arith.constant 0 : i32
    return %arg0, %c0_i32 : i32, i32
  }
}

</mosaic_0001>

<llo_original>
// kernel: tpu_custom_call.1
$region0: #{tpu_custom_call.1}
  #allocation0 [shape = 'u32[]', space=smem, size = 0x4, offset = 0x4, fixed_abs, tag = 'smem constant byte address 0x4 - core index']
  #allocation1 [shape = 'u32[144,128]{1,0:T(1,128)}', space=vmem, size = 0x12000, scoped, tag = 'internal scratch']
  %s0 = inlined_call_operand.vmem [shape: bf16[16,16], index: 0, kind: input, shape index: {}]
  %s1 = inlined_call_operand.vmem [shape: bf16[16,8], index: 1, kind: input, shape index: {}]
  %s2 = inlined_call_operand.vmem [shape: bf16[16,8], index: 2, kind: input, shape index: {}]
  %s3 = inlined_call_operand.vmem [shape: bf16[8,40], index: 3, kind: input, shape index: {}]
  %s4 = inlined_call_operand.hbm [shape: bf16[16,32], index: 4, kind: output, shape index: {}]
  %s5 = sld [smem:[#allocation0]]
  $region26: #{tpu_custom_call.1} parent=0
    _
  %s7 = ssub.s32 1, %s5
  %s8 = scalar_select 0, %s7, %s5
  $region1: #{tpu_custom_call.1} parent=0
    #allocation2 [shape = 'u8[4096]{0}', space=vmem, size = 0x1000, scoped, tag = 'output window, operand 0, single buffered']
    #allocation3 [shape = 's32[1]{0}', space=sflag, size = 0x4, scoped, tag = 'scoped memory for tpu_custom_call.1']
    %9 = vsyncpa [#allocation3], 0
    // Predicated region
    $region2: #{tpu_custom_call.1} parent=1 // pred_check
      _
    $region3: #{tpu_custom_call.1} parent=1 // pred_check_branch
      %11 = sbr.rel (0) target = $region5
    $region4: #{tpu_custom_call.1} parent=1 // pred_region
      _
    $region5: #{tpu_custom_call.1} parent=1 // pred_fallthru
      _
    // Predicated region
    $region6: #{tpu_custom_call.1} parent=1 // pred_check
      _
    $region7: #{tpu_custom_call.1} parent=1 // pred_check_branch
      %13 = sbr.rel (0) target = $region9
    $region8: #{tpu_custom_call.1} parent=1 // pred_region
      _
    $region9: #{tpu_custom_call.1} parent=1 // pred_fallthru
      _
    // Predicated region
    $region10: #{tpu_custom_call.1} parent=1 // pred_check
      _
    $region11: #{tpu_custom_call.1} parent=1 // pred_check_branch
      %15 = sbr.rel (0) target = $region13
    $region12: #{tpu_custom_call.1} parent=1 // pred_region
      _
    $region13: #{tpu_custom_call.1} parent=1 // pred_fallthru
      _
    // Predicated region
    $region14: #{tpu_custom_call.1} parent=1 // pred_check
      _
    $region15: #{tpu_custom_call.1} parent=1 // pred_check_branch
      %17 = sbr.rel (0) target = $region17
    $region16: #{tpu_custom_call.1} parent=1 // pred_region
      _
    $region17: #{tpu_custom_call.1} parent=1 // pred_fallthru
      _
    %v19 = vld [vmem:[%s0] sm:$0xf]
    %v20 = vld [vmem:[%s0 + $0x4] sm:$0xf]
    %v21 = vunpack.c.l.bf16 %v19
    %v22 = vunpack.c.l.bf16 %v20
    %v23 = vld [vmem:[%s3] sm:$0xf]
    %v24 = vld [vmem:[%s1] sm:$0xf]
    %v25 = vld [vmem:[%s1 + $0x4] sm:$0xf]
    %v28 = vunpack.c.l.b16 %v24
    %v29 = vunpack.c.l.b16 %v25
    %v30 = vpack.c.b16 %v29, %v28
    %vm31 = vcmask 64512
    %v33 = vsel %vm31, %v30, 0
    %vm35 = vcmask 1043456
    %v37 = vsel %vm35, %v23, 0
    %39 = vmatprep.subr.bf16.mxu0 0
    %40 = vmatpush1.bf16.msra.mxu0 0
    %41 = vmatprep.subr.bf16.mxu0 0
    %42 = vmatpush1.bf16.msra.mxu0 0
    %43 = vmatprep.subr.bf16.mxu0 0
    %44 = vmatpush1.bf16.msra.mxu0 0
    %45 = vmatprep.subr.bf16.mxu0 0
    %46 = vmatpush1.bf16.msra.mxu0 0
    %47 = vmatprep.subr.bf16.mxu0 0
    %48 = vmatpush1.bf16.msra.mxu0 0
    %49 = vmatprep.subr.bf16.mxu0 0
    %50 = vmatpush1.bf16.msra.mxu0 0
    %51 = vmatprep.subr.bf16.mxu0 0
    %52 = vmatpush1.bf16.msra.mxu0 0
    %53 = vmatprep.subr.bf16.mxu0 0
    %54 = vmatpush1.bf16.msra.mxu0 %v37
    %55 = vmatprep.subr.bf16.mxu0 0
    %56 = vmatpush2.bf16.msra.mxu0 0
    %57 = vmatprep.subr.bf16.mxu0 0
    %58 = vmatpush2.bf16.msra.mxu0 0
    %59 = vmatprep.subr.bf16.mxu0 0
    %60 = vmatpush2.bf16.msra.mxu0 0
    %61 = vmatprep.subr.bf16.mxu0 0
    %62 = vmatpush2.bf16.msra.mxu0 0
    %63 = vmatprep.subr.bf16.mxu0 0
    %64 = vmatpush2.bf16.msra.mxu0 0
    %65 = vmatprep.subr.bf16.mxu0 0
    %66 = vmatpush2.bf16.msra.mxu0 0
    %67 = vmatprep.subr.bf16.mxu0 0
    %68 = vmatpush2.bf16.msra.mxu0 0
    %69 = vmatprep.subr.bf16.mxu0 0
    %70 = vmatpush2.bf16.msra.mxu0 0
    %71 = vmatprep.mubr.bf16.mxu0 0
    %72 = vmatmul.mubr.bf16.gmra.mxu0 %v33
    %v73 = vpop.f32.mrf.mxu0
    %v74 = vadd.f32 0.0, %v73
    %v75 = vpop.f32.mrf.mxu0
    %v76 = vpop.f32.mrf.mxu0
    %v77 = vadd.f32 0.0, %v76
    %v78 = vpop.f32.mrf.mxu0
    %79 = vdwg.mxu0
    %v80 = vpack.c.bf16 %v77, %v74
    %v81 = vlaneseq
    %v82 = vshrl.u32 %v81, 7
    %v83 = vlaneseq
    %v84 = vand.u32 %v83, 127
    %vm85 = vcmp.eq.s32.totalorder %v82, %v84
    %v86 = vsel %vm85, 1, 0
    %v87 = vcvt.s32.f32 %v86
    %90 = vrot.lane.b32.xlu0 %v74, 92
    %v91 = vpop.permute.xlu0 %90
    %92 = vrot.lane.b32.xlu0 %v77, 92
    %v93 = vpop.permute.xlu0 %92
    %vm94 = vcmask 31744
    %v96 = vsel %vm94, %v87, 0
    %v98 = vsel %vm94, %v91, 0
    %v100 = vsel %vm94, %v93, 0
    %102 = vmatprep.subr.mxu0 0.0
    %103 = vmatpush1.xpose.msra.mxu0 0.0
    %104 = vmatprep.subr.mxu0 0.0
    %105 = vmatpush1.xpose.msra.mxu0 0.0
    %106 = vmatprep.subr.mxu0 0.0
    %107 = vmatpush1.xpose.msra.mxu0 0.0
    %108 = vmatprep.subr.mxu0 0.0
    %109 = vmatpush1.xpose.msra.mxu0 0.0
    %110 = vmatprep.subr.mxu0 0.0
    %111 = vmatpush1.xpose.msra.mxu0 0.0
    %112 = vmatprep.subr.mxu0 0.0
    %113 = vmatpush1.xpose.msra.mxu0 0.0
    %114 = vmatprep.subr.mxu0 0.0
    %115 = vmatpush1.xpose.msra.mxu0 0.0
    %116 = vmatprep.subr.mxu0 0.0
    %117 = vmatpush1.xpose.msra.mxu0 0.0
    %118 = vmatprep.subr.mxu0 0.0
    %119 = vmatpush1.xpose.msra.mxu0 0.0
    %120 = vmatprep.subr.mxu0 0.0
    %121 = vmatpush1.xpose.msra.mxu0 0.0
    %122 = vmatprep.subr.mxu0 0.0
    %123 = vmatpush1.xpose.msra.mxu0 0.0
    %124 = vmatprep.subr.mxu0 0.0
    %125 = vmatpush1.xpose.msra.mxu0 0.0
    %126 = vmatprep.subr.mxu0 0.0
    %127 = vmatpush1.xpose.msra.mxu0 0.0
    %128 = vmatprep.subr.mxu0 0.0
    %129 = vmatpush1.xpose.msra.mxu0 0.0
    %130 = vmatprep.subr.mxu0 0.0
    %131 = vmatpush1.xpose.msra.mxu0 %v100
    %132 = vmatprep.subr.mxu0 0.0
    %133 = vmatpush1.xpose.msra.mxu0 %v98
    %134 = vmatprep.subr.mxu0 0.0
    %135 = vmatpush2.xpose.msra.mxu0 0.0
    %136 = vmatprep.subr.mxu0 0.0
    %137 = vmatpush2.xpose.msra.mxu0 0.0
    %138 = vmatprep.subr.mxu0 0.0
    %139 = vmatpush2.xpose.msra.mxu0 0.0
    %140 = vmatprep.subr.mxu0 0.0
    %141 = vmatpush2.xpose.msra.mxu0 0.0
    %142 = vmatprep.subr.mxu0 0.0
    %143 = vmatpush2.xpose.msra.mxu0 0.0
    %144 = vmatprep.subr.mxu0 0.0
    %145 = vmatpush2.xpose.msra.mxu0 0.0
    %146 = vmatprep.subr.mxu0 0.0
    %147 = vmatpush2.xpose.msra.mxu0 0.0
    %148 = vmatprep.subr.mxu0 0.0
    %149 = vmatpush2.xpose.msra.mxu0 0.0
    %150 = vmatprep.subr.mxu0 0.0
    %151 = vmatpush2.xpose.msra.mxu0 0.0
    %152 = vmatprep.subr.mxu0 0.0
    %153 = vmatpush2.xpose.msra.mxu0 0.0
    %154 = vmatprep.subr.mxu0 0.0
    %155 = vmatpush2.xpose.msra.mxu0 0.0
    %156 = vmatprep.subr.mxu0 0.0
    %157 = vmatpush2.xpose.msra.mxu0 0.0
    %158 = vmatprep.subr.mxu0 0.0
    %159 = vmatpush2.xpose.msra.mxu0 0.0
    %160 = vmatprep.subr.mxu0 0.0
    %161 = vmatpush2.xpose.msra.mxu0 0.0
    %162 = vmatprep.subr.mxu0 0.0
    %163 = vmatpush2.xpose.msra.mxu0 0.0
    %164 = vmatprep.subr.mxu0 0.0
    %165 = vmatpush2.xpose.msra.mxu0 0.0
    %166 = vmatprep.mubr.f32.mxu0 0.0
    %167 = vmatmul.mubr.f32.gmra.mxu0 %v96
    %v168 = vpop.f32.mrf.mxu0
    %v169 = vadd.f32 0.0, %v168
    %v170 = vpop.f32.mrf.mxu0
    %171 = vdwg.mxu0
    %v172 = vld [vmem:[%s2] sm:$0xf]
    %v173 = vld [vmem:[%s2 + $0x4] sm:$0xf]
    %v176 = vunpack.c.l.b16 %v172
    %v177 = vunpack.c.l.b16 %v173
    %v178 = vpack.c.b16 %v177, %v176
    %v180 = vsel %vm31, %v178, 0
    %182 = vmatprep.subr.bf16.mxu0 0
    %183 = vmatpush1.bf16.msra.mxu0 0
    %184 = vmatprep.subr.bf16.mxu0 0
    %185 = vmatpush1.bf16.msra.mxu0 0
    %186 = vmatprep.subr.bf16.mxu0 0
    %187 = vmatpush1.bf16.msra.mxu0 0
    %188 = vmatprep.subr.bf16.mxu0 0
    %189 = vmatpush1.bf16.msra.mxu0 0
    %190 = vmatprep.subr.bf16.mxu0 0
    %191 = vmatpush1.bf16.msra.mxu0 0
    %192 = vmatprep.subr.bf16.mxu0 0
    %193 = vmatpush1.bf16.msra.mxu0 0
    %194 = vmatprep.subr.bf16.mxu0 0
    %195 = vmatpush1.bf16.msra.mxu0 0
    %196 = vmatprep.subr.bf16.mxu0 0
    %197 = vmatpush1.bf16.msra.mxu0 %v37
    %198 = vmatprep.subr.bf16.mxu0 0
    %199 = vmatpush2.bf16.msra.mxu0 0
    %200 = vmatprep.subr.bf16.mxu0 0
    %201 = vmatpush2.bf16.msra.mxu0 0
    %202 = vmatprep.subr.bf16.mxu0 0
    %203 = vmatpush2.bf16.msra.mxu0 0
    %204 = vmatprep.subr.bf16.mxu0 0
    %205 = vmatpush2.bf16.msra.mxu0 0
    %206 = vmatprep.subr.bf16.mxu0 0
    %207 = vmatpush2.bf16.msra.mxu0 0
    %208 = vmatprep.subr.bf16.mxu0 0
    %209 = vmatpush2.bf16.msra.mxu0 0
    %210 = vmatprep.subr.bf16.mxu0 0
    %211 = vmatpush2.bf16.msra.mxu0 0
    %212 = vmatprep.subr.bf16.mxu0 0
    %213 = vmatpush2.bf16.msra.mxu0 0
    %214 = vmatprep.mubr.bf16.mxu0 0
    %215 = vmatmul.mubr.bf16.gmra.mxu0 %v180
    %v216 = vpop.f32.mrf.mxu0
    %v217 = vadd.f32 0.0, %v216
    %v218 = vpop.f32.mrf.mxu0
    %v219 = vpop.f32.mrf.mxu0
    %v220 = vadd.f32 0.0, %v219
    %v221 = vpop.f32.mrf.mxu0
    %222 = vdwg.mxu0
    %224 = vset.pattern.permute.xlu0 32
    %225 = vperm.xlu0 %224, %v217
    %v226 = vpop.permute.xlu0 %225
    %229 = vset.pattern.permute.xlu0 32
    %230 = vperm.xlu0 %229, %v220
    %v231 = vpop.permute.xlu0 %230
    %v233 = vlaneseq
    %v234 = vshrl.u32 %v233, 7
    %v235 = vsub.s32 0, %v234
    %v236 = vrot.slane %v169, %v235
    %v237 = vadd.f32 %v226, %v236
    %v238 = vadd.f32 %v231, %v236
    %vm239 = vcmp.gt.f32.partialorder %v237, 0.0
    %vm240 = vcmp.gt.f32.partialorder %v238, 0.0
    %v241 = vmul.f32 %v237, 0.2
    %v242 = vmul.f32 %v238, 0.2
    %v243 = vsel %vm239, %v237, %v241
    %v244 = vsel %vm240, %v238, %v242
    %v245 = vadd.f32 %v243, %v21
    %v246 = vadd.f32 %v244, %v22
    %vm247 = vcmask 130048
    %v248 = vsel %vm247, %v245, -inf
    %249 = vmax.xlane.f32.xlu0 %v248
    %v250 = vpop.xlane.xlu0 %249
    %v251 = vsel %vm247, %v246, -inf
    %252 = vmax.xlane.f32.xlu0 %v251
    %v253 = vpop.xlane.xlu0 %252
    %v254 = vsub.f32 %v245, %v250
    %v255 = vsub.f32 %v246, %v253
    %v256 = vmul.f32 %v254, 1.442695
    %v257 = vpow.pop %v256
    %v258 = vmul.f32 %v255, 1.442695
    %v259 = vpow.pop %v258
    %v260 = vsel %vm247, %v257, 0.0
    %261 = vadd.xlane.f32.xlu0 %v260
    %v262 = vpop.xlane.xlu0 %261
    %v263 = vsel %vm247, %v259, 0.0
    %264 = vadd.xlane.f32.xlu0 %v263
    %v265 = vpop.xlane.xlu0 %264
    %v266 = vpack.c.bf16 %v259, %v257
    %v268 = vsel %vm247, %v266, 0
    %270 = vmatprep.subr.bf16.mxu0 0
    %271 = vmatpush1.bf16.msra.mxu0 0
    %272 = vmatprep.subr.bf16.mxu0 0
    %273 = vmatpush1.bf16.msra.mxu0 0
    %274 = vmatprep.subr.bf16.mxu0 0
    %275 = vmatpush1.bf16.msra.mxu0 0
    %276 = vmatprep.subr.bf16.mxu0 0
    %277 = vmatpush1.bf16.msra.mxu0 0
    %278 = vmatprep.subr.bf16.mxu0 0
    %279 = vmatpush1.bf16.msra.mxu0 0
    %280 = vmatprep.subr.bf16.mxu0 0
    %281 = vmatpush1.bf16.msra.mxu0 0
    %282 = vmatprep.subr.bf16.mxu0 0
    %283 = vmatpush1.bf16.msra.mxu0 0
    %284 = vmatprep.subr.bf16.mxu0 0
    %285 = vmatpush1.bf16.msra.mxu0 %v80
    %286 = vmatprep.subr.bf16.mxu0 0
    %287 = vmatpush2.bf16.msra.mxu0 0
    %288 = vmatprep.subr.bf16.mxu0 0
    %289 = vmatpush2.bf16.msra.mxu0 0
    %290 = vmatprep.subr.bf16.mxu0 0
    %291 = vmatpush2.bf16.msra.mxu0 0
    %292 = vmatprep.subr.bf16.mxu0 0
    %293 = vmatpush2.bf16.msra.mxu0 0
    %294 = vmatprep.subr.bf16.mxu0 0
    %295 = vmatpush2.bf16.msra.mxu0 0
    %296 = vmatprep.subr.bf16.mxu0 0
    %297 = vmatpush2.bf16.msra.mxu0 0
    %298 = vmatprep.subr.bf16.mxu0 0
    %299 = vmatpush2.bf16.msra.mxu0 0
    %300 = vmatprep.subr.bf16.mxu0 0
    %301 = vmatpush2.bf16.msra.mxu0 0
    %302 = vmatprep.mubr.bf16.mxu0 0
    %303 = vmatmul.mubr.bf16.gmra.mxu0 %v268
    %v304 = vpop.f32.mrf.mxu0
    %v305 = vadd.f32 0.0, %v304
    %v306 = vpop.f32.mrf.mxu0
    %v307 = vpop.f32.mrf.mxu0
    %v308 = vadd.f32 0.0, %v307
    %v309 = vpop.f32.mrf.mxu0
    %310 = vdwg.mxu0
    %v311 = vrcp.pop %v262
    %v312 = vrcp.pop %v265
    %v313 = vmul.f32 %v305, %v311
    %v314 = vmul.f32 %v308, %v312
    %315 = vset.pattern.permute.xlu0 33
    %316 = vperm.xlu0 %315, %v217
    %v317 = vpop.permute.xlu0 %316
    %319 = vset.pattern.permute.xlu0 33
    %320 = vperm.xlu0 %319, %v220
    %v321 = vpop.permute.xlu0 %320
    %v323 = vlaneseq
    %v324 = vshrl.u32 %v323, 7
    %v325 = vsub.s32 1, %v324
    %v326 = vrot.slane %v169, %v325
    %v327 = vadd.f32 %v317, %v326
    %v328 = vadd.f32 %v321, %v326
    %vm329 = vcmp.gt.f32.partialorder %v327, 0.0
    %vm330 = vcmp.gt.f32.partialorder %v328, 0.0
    %v331 = vmul.f32 %v327, 0.2
    %v332 = vmul.f32 %v328, 0.2
    %v333 = vsel %vm329, %v327, %v331
    %v334 = vsel %vm330, %v328, %v332
    %v335 = vadd.f32 %v333, %v21
    %v336 = vadd.f32 %v334, %v22
    %v337 = vsel %vm247, %v335, -inf
    %338 = vmax.xlane.f32.xlu0 %v337
    %v339 = vpop.xlane.xlu0 %338
    %v340 = vsel %vm247, %v336, -inf
    %341 = vmax.xlane.f32.xlu0 %v340
    %v342 = vpop.xlane.xlu0 %341
    %v343 = vsub.f32 %v335, %v339
    %v344 = vsub.f32 %v336, %v342
    %v345 = vmul.f32 %v343, 1.442695
    %v346 = vpow.pop %v345
    %v347 = vmul.f32 %v344, 1.442695
    %v348 = vpow.pop %v347
    %v349 = vsel %vm247, %v346, 0.0
    %350 = vadd.xlane.f32.xlu0 %v349
    %v351 = vpop.xlane.xlu0 %350
    %v352 = vsel %vm247, %v348, 0.0
    %353 = vadd.xlane.f32.xlu0 %v352
    %v354 = vpop.xlane.xlu0 %353
    %v355 = vpack.c.bf16 %v348, %v346
    %357 = vrot.lane.b32.xlu0 %v80, 120
    %v358 = vpop.permute.xlu0 %357
    %v361 = vsel %vm247, %v355, 0
    %363 = vmatprep.subr.bf16.mxu0 0
    %364 = vmatpush1.bf16.msra.mxu0 0
    %365 = vmatprep.subr.bf16.mxu0 0
    %366 = vmatpush1.bf16.msra.mxu0 0
    %367 = vmatprep.subr.bf16.mxu0 0
    %368 = vmatpush1.bf16.msra.mxu0 0
    %369 = vmatprep.subr.bf16.mxu0 0
    %370 = vmatpush1.bf16.msra.mxu0 0
    %371 = vmatprep.subr.bf16.mxu0 0
    %372 = vmatpush1.bf16.msra.mxu0 0
    %373 = vmatprep.subr.bf16.mxu0 0
    %374 = vmatpush1.bf16.msra.mxu0 0
    %375 = vmatprep.subr.bf16.mxu0 0
    %376 = vmatpush1.bf16.msra.mxu0 0
    %377 = vmatprep.subr.bf16.mxu0 0
    %378 = vmatpush1.bf16.msra.mxu0 %v358
    %379 = vmatprep.subr.bf16.mxu0 0
    %380 = vmatpush2.bf16.msra.mxu0 0
    %381 = vmatprep.subr.bf16.mxu0 0
    %382 = vmatpush2.bf16.msra.mxu0 0
    %383 = vmatprep.subr.bf16.mxu0 0
    %384 = vmatpush2.bf16.msra.mxu0 0
    %385 = vmatprep.subr.bf16.mxu0 0
    %386 = vmatpush2.bf16.msra.mxu0 0
    %387 = vmatprep.subr.bf16.mxu0 0
    %388 = vmatpush2.bf16.msra.mxu0 0
    %389 = vmatprep.subr.bf16.mxu0 0
    %390 = vmatpush2.bf16.msra.mxu0 0
    %391 = vmatprep.subr.bf16.mxu0 0
    %392 = vmatpush2.bf16.msra.mxu0 0
    %393 = vmatprep.subr.bf16.mxu0 0
    %394 = vmatpush2.bf16.msra.mxu0 0
    %395 = vmatprep.mubr.bf16.mxu0 0
    %396 = vmatmul.mubr.bf16.gmra.mxu0 %v361
    %v397 = vpop.f32.mrf.mxu0
    %v398 = vadd.f32 0.0, %v397
    %v399 = vpop.f32.mrf.mxu0
    %v400 = vpop.f32.mrf.mxu0
    %v401 = vadd.f32 0.0, %v400
    %v402 = vpop.f32.mrf.mxu0
    %403 = vdwg.mxu0
    %v404 = vrcp.pop %v351
    %v405 = vrcp.pop %v354
    %v406 = vmul.f32 %v398, %v404
    %v407 = vmul.f32 %v401, %v405
    %408 = vset.pattern.permute.xlu0 34
    %409 = vperm.xlu0 %408, %v217
    %v410 = vpop.permute.xlu0 %409
    %412 = vset.pattern.permute.xlu0 34
    %413 = vperm.xlu0 %412, %v220
    %v414 = vpop.permute.xlu0 %413
    %v416 = vlaneseq
    %v417 = vshrl.u32 %v416, 7
    %v418 = vsub.s32 2, %v417
    %v419 = vrot.slane %v169, %v418
    %v420 = vadd.f32 %v410, %v419
    %v421 = vadd.f32 %v414, %v419
    %vm422 = vcmp.gt.f32.partialorder %v420, 0.0
    %vm423 = vcmp.gt.f32.partialorder %v421, 0.0
    %v424 = vmul.f32 %v420, 0.2
    %v425 = vmul.f32 %v421, 0.2
    %v426 = vsel %vm422, %v420, %v424
    %v427 = vsel %vm423, %v421, %v425
    %v428 = vadd.f32 %v426, %v21
    %v429 = vadd.f32 %v427, %v22
    %v430 = vsel %vm247, %v428, -inf
    %431 = vmax.xlane.f32.xlu0 %v430
    %v432 = vpop.xlane.xlu0 %431
    %v433 = vsel %vm247, %v429, -inf
    %434 = vmax.xlane.f32.xlu0 %v433
    %v435 = vpop.xlane.xlu0 %434
    %v436 = vsub.f32 %v428, %v432
    %v437 = vsub.f32 %v429, %v435
    %v438 = vmul.f32 %v436, 1.442695
    %v439 = vpow.pop %v438
    %v440 = vmul.f32 %v437, 1.442695
    %v441 = vpow.pop %v440
    %v442 = vsel %vm247, %v439, 0.0
    %443 = vadd.xlane.f32.xlu0 %v442
    %v444 = vpop.xlane.xlu0 %443
    %v445 = vsel %vm247, %v441, 0.0
    %446 = vadd.xlane.f32.xlu0 %v445
    %v447 = vpop.xlane.xlu0 %446
    %v448 = vpack.c.bf16 %v441, %v439
    %449 = vrot.lane.b32.xlu0 %v80, 112
    %v450 = vpop.permute.xlu0 %449
    %v453 = vsel %vm247, %v448, 0
    %455 = vmatprep.subr.bf16.mxu0 0
    %456 = vmatpush1.bf16.msra.mxu0 0
    %457 = vmatprep.subr.bf16.mxu0 0
    %458 = vmatpush1.bf16.msra.mxu0 0
    %459 = vmatprep.subr.bf16.mxu0 0
    %460 = vmatpush1.bf16.msra.mxu0 0
    %461 = vmatprep.subr.bf16.mxu0 0
    %462 = vmatpush1.bf16.msra.mxu0 0
    %463 = vmatprep.subr.bf16.mxu0 0
    %464 = vmatpush1.bf16.msra.mxu0 0
    %465 = vmatprep.subr.bf16.mxu0 0
    %466 = vmatpush1.bf16.msra.mxu0 0
    %467 = vmatprep.subr.bf16.mxu0 0
    %468 = vmatpush1.bf16.msra.mxu0 0
    %469 = vmatprep.subr.bf16.mxu0 0
    %470 = vmatpush1.bf16.msra.mxu0 %v450
    %471 = vmatprep.subr.bf16.mxu0 0
    %472 = vmatpush2.bf16.msra.mxu0 0
    %473 = vmatprep.subr.bf16.mxu0 0
    %474 = vmatpush2.bf16.msra.mxu0 0
    %475 = vmatprep.subr.bf16.mxu0 0
    %476 = vmatpush2.bf16.msra.mxu0 0
    %477 = vmatprep.subr.bf16.mxu0 0
    %478 = vmatpush2.bf16.msra.mxu0 0
    %479 = vmatprep.subr.bf16.mxu0 0
    %480 = vmatpush2.bf16.msra.mxu0 0
    %481 = vmatprep.subr.bf16.mxu0 0
    %482 = vmatpush2.bf16.msra.mxu0 0
    %483 = vmatprep.subr.bf16.mxu0 0
    %484 = vmatpush2.bf16.msra.mxu0 0
    %485 = vmatprep.subr.bf16.mxu0 0
    %486 = vmatpush2.bf16.msra.mxu0 0
    %487 = vmatprep.mubr.bf16.mxu0 0
    %488 = vmatmul.mubr.bf16.gmra.mxu0 %v453
    %v489 = vpop.f32.mrf.mxu0
    %v490 = vadd.f32 0.0, %v489
    %v491 = vpop.f32.mrf.mxu0
    %v492 = vpop.f32.mrf.mxu0
    %v493 = vadd.f32 0.0, %v492
    %v494 = vpop.f32.mrf.mxu0
    %495 = vdwg.mxu0
    %v496 = vrcp.pop %v444
    %v497 = vrcp.pop %v447
    %v498 = vmul.f32 %v490, %v496
    %v499 = vmul.f32 %v493, %v497
    %500 = vset.pattern.permute.xlu0 35
    %501 = vperm.xlu0 %500, %v217
    %v502 = vpop.permute.xlu0 %501
    %504 = vset.pattern.permute.xlu0 35
    %505 = vperm.xlu0 %504, %v220
    %v506 = vpop.permute.xlu0 %505
    %v508 = vlaneseq
    %v509 = vshrl.u32 %v508, 7
    %v510 = vsub.s32 3, %v509
    %v511 = vrot.slane %v169, %v510
    %v512 = vadd.f32 %v502, %v511
    %v513 = vadd.f32 %v506, %v511
    %vm514 = vcmp.gt.f32.partialorder %v512, 0.0
    %vm515 = vcmp.gt.f32.partialorder %v513, 0.0
    %v516 = vmul.f32 %v512, 0.2
    %v517 = vmul.f32 %v513, 0.2
    %v518 = vsel %vm514, %v512, %v516
    %v519 = vsel %vm515, %v513, %v517
    %v520 = vadd.f32 %v518, %v21
    %v521 = vadd.f32 %v519, %v22
    %v522 = vsel %vm247, %v520, -inf
    %523 = vmax.xlane.f32.xlu0 %v522
    %v524 = vpop.xlane.xlu0 %523
    %v525 = vsel %vm247, %v521, -inf
    %526 = vmax.xlane.f32.xlu0 %v525
    %v527 = vpop.xlane.xlu0 %526
    %v528 = vsub.f32 %v520, %v524
    %v529 = vsub.f32 %v521, %v527
    %v530 = vmul.f32 %v528, 1.442695
    %v531 = vpow.pop %v530
    %v532 = vmul.f32 %v529, 1.442695
    %v533 = vpow.pop %v532
    %v534 = vsel %vm247, %v531, 0.0
    %535 = vadd.xlane.f32.xlu0 %v534
    %v536 = vpop.xlane.xlu0 %535
    %v537 = vsel %vm247, %v533, 0.0
    %538 = vadd.xlane.f32.xlu0 %v537
    %v539 = vpop.xlane.xlu0 %538
    %v540 = vpack.c.bf16 %v533, %v531
    %541 = vrot.lane.b32.xlu0 %v80, 104
    %v542 = vpop.permute.xlu0 %541
    %v545 = vsel %vm247, %v540, 0
    %547 = vmatprep.subr.bf16.mxu0 0
    %548 = vmatpush1.bf16.msra.mxu0 0
    %549 = vmatprep.subr.bf16.mxu0 0
    %550 = vmatpush1.bf16.msra.mxu0 0
    %551 = vmatprep.subr.bf16.mxu0 0
    %552 = vmatpush1.bf16.msra.mxu0 0
    %553 = vmatprep.subr.bf16.mxu0 0
    %554 = vmatpush1.bf16.msra.mxu0 0
    %555 = vmatprep.subr.bf16.mxu0 0
    %556 = vmatpush1.bf16.msra.mxu0 0
    %557 = vmatprep.subr.bf16.mxu0 0
    %558 = vmatpush1.bf16.msra.mxu0 0
    %559 = vmatprep.subr.bf16.mxu0 0
    %560 = vmatpush1.bf16.msra.mxu0 0
    %561 = vmatprep.subr.bf16.mxu0 0
    %562 = vmatpush1.bf16.msra.mxu0 %v542
    %563 = vmatprep.subr.bf16.mxu0 0
    %564 = vmatpush2.bf16.msra.mxu0 0
    %565 = vmatprep.subr.bf16.mxu0 0
    %566 = vmatpush2.bf16.msra.mxu0 0
    %567 = vmatprep.subr.bf16.mxu0 0
    %568 = vmatpush2.bf16.msra.mxu0 0
    %569 = vmatprep.subr.bf16.mxu0 0
    %570 = vmatpush2.bf16.msra.mxu0 0
    %571 = vmatprep.subr.bf16.mxu0 0
    %572 = vmatpush2.bf16.msra.mxu0 0
    %573 = vmatprep.subr.bf16.mxu0 0
    %574 = vmatpush2.bf16.msra.mxu0 0
    %575 = vmatprep.subr.bf16.mxu0 0
    %576 = vmatpush2.bf16.msra.mxu0 0
    %577 = vmatprep.subr.bf16.mxu0 0
    %578 = vmatpush2.bf16.msra.mxu0 0
    %579 = vmatprep.mubr.bf16.mxu0 0
    %580 = vmatmul.mubr.bf16.gmra.mxu0 %v545
    %v581 = vpop.f32.mrf.mxu0
    %v582 = vadd.f32 0.0, %v581
    %v583 = vpop.f32.mrf.mxu0
    %v584 = vpop.f32.mrf.mxu0
    %v585 = vadd.f32 0.0, %v584
    %v586 = vpop.f32.mrf.mxu0
    %587 = vdwg.mxu0
    %v588 = vrcp.pop %v536
    %v589 = vrcp.pop %v539
    %v590 = vmul.f32 %v582, %v588
    %v591 = vmul.f32 %v585, %v589
    %594 = vrot.lane.b32.xlu0 %v406, 8
    %v595 = vpop.permute.xlu0 %594
    %596 = vrot.lane.b32.xlu0 %v407, 8
    %v597 = vpop.permute.xlu0 %596
    %602 = vrot.lane.b32.xlu0 %v498, 16
    %v603 = vpop.permute.xlu0 %602
    %604 = vrot.lane.b32.xlu0 %v499, 16
    %v605 = vpop.permute.xlu0 %604
    %610 = vrot.lane.b32.xlu0 %v590, 24
    %v611 = vpop.permute.xlu0 %610
    %612 = vrot.lane.b32.xlu0 %v591, 24
    %v613 = vpop.permute.xlu0 %612
    %v616 = vsel %vm31, %v313, %v595
    %v617 = vsel %vm31, %v314, %v597
    %v618 = vsel %vm247, %v616, %v603
    %v619 = vsel %vm247, %v617, %v605
    %vm620 = vcmask 195584
    %v621 = vsel %vm620, %v618, %v611
    %v622 = vsel %vm620, %v619, %v613
    %vm623 = vcmp.gt.f32.partialorder %v621, 0.0
    %vm624 = vcmp.gt.f32.partialorder %v622, 0.0
    %v625 = vmin.f32 %v621, 0.0
    %v626 = vmin.f32 %v622, 0.0
    %v627 = vmul.f32 %v625, 1.442695
    %v628 = vpow.pop %v627
    %v629 = vmul.f32 %v626, 1.442695
    %v630 = vpow.pop %v629
    %v631 = vsub.f32 %v628, 1.0
    %v632 = vsub.f32 %v630, 1.0
    %v633 = vsel %vm623, %v621, %v631
    %v634 = vsel %vm624, %v622, %v632
    %v635 = vpack.c.bf16 %v634, %v633
    %v637 = vunpack.c.l.b16 %v635
    %v638 = vunpack.c.h.b16 %v635
    %v639 = vpack.c.b16 %v637, %v637
    %v640 = vpack.c.b16 %v638, %v638
    %vm643 = vcmask 257024
    %644 = vst.msk [vmem:[#allocation2] sm:$0xf] %vm643, %v639
    %645 = vst.msk [vmem:[#allocation2 + $0x4] sm:$0xf] %vm643, %v640
    // Predicated region
    $region18: #{tpu_custom_call.1} parent=1 // pred_check
      _
    $region19: #{tpu_custom_call.1} parent=1 // pred_check_branch
      %647 = sbr.rel (0) target = $region21
    $region20: #{tpu_custom_call.1} parent=1 // pred_region
      %s649 = ssub.s32 128, 128
      %650 = vsyncadd [#allocation3], %s649
      %s651 = sshll.u32 [#allocation2], 4
      %s652 = int_to_ptr.vmem [resolvable:$true] %s651
      %657 = dma.vmem_to_hbm [thread:$0]  %s652, 128, %s4, [#allocation3], 64, 64, 4
    $region21: #{tpu_custom_call.1} parent=1 // pred_fallthru
      _
    // Predicated region
    $region22: #{tpu_custom_call.1} parent=1 // pred_check
      _
    $region23: #{tpu_custom_call.1} parent=1 // pred_check_branch
      %659 = sbr.rel (0) target = $region25
    $region24: #{tpu_custom_call.1} parent=1 // pred_region
      %660 = dma.done [#allocation3], 128
    $region25: #{tpu_custom_call.1} parent=1 // pred_fallthru
      _
    %661 = vsyncpa [#allocation3], 1

</llo_original>
